<compile_context>
chip_gen: v5e
topology: v5e:2x2
jax: 0.10.0
libtpu: 0.0.40
codegen_flags: <defaults>
</compile_context>

<pallas_src>
import functools

import jax
import jax.numpy as jnp
from jax.experimental import pallas as pl
from jax.experimental.pallas import tpu as pltpu


def _round_up(x: int, m: int) -> int:
    return ((x + m - 1) // m) * m


# ----------------------------------------------------------------------------
# Sample-weighted MSE reduction with the `weight` scale fused into finalize.
# ----------------------------------------------------------------------------
def _wmse_kernel(pred_ref, tgt_ref, sw_ref, out_ref, acc_ref, *,
                 scale, B, D, tile_b, tile_d, mask_rows, mask_cols):
    i = pl.program_id(0)          # batch chunk   ("parallel" -> megacore)
    j = pl.program_id(1)          # feature chunk ("arbitrary", reduction, last)
    nj = pl.num_programs(1)

    @pl.when(j == 0)
    def _():
        acc_ref[...] = jnp.zeros_like(acc_ref)

    d = pred_ref[...].astype(jnp.float32) - tgt_ref[...].astype(jnp.float32)
    contrib = d * d                               # pure VPU; sw hoisted out

    if mask_cols:
        # Only the last feature block is ragged; interior steps stay mask-free.
        @pl.when(j == nj - 1)
        def _():
            cols = (jax.lax.broadcasted_iota(jnp.int32, (tile_b, tile_d), 1)
                    + j * tile_d)
            # select-after-compute: padded (possibly NaN/Inf) data discarded.
            acc_ref[...] += jnp.where(cols < D, contrib, 0.0)

        @pl.when(j != nj - 1)
        def _():
            acc_ref[...] += contrib
    else:
        acc_ref[...] += contrib

    @pl.when(j == nj - 1)
    def _():
        # One cross-lane reduce per batch chunk; sample-weight multiply done
        # here on (tile_b, 1) instead of (tile_b, tile_d) every step.
        row = jnp.sum(acc_ref[...], axis=1, keepdims=True)      # (tile_b, 1)
        c = row * sw_ref[...].astype(jnp.float32)
        if mask_rows:
            ridx = (jax.lax.broadcasted_iota(jnp.int32, (tile_b, 1), 0)
                    + i * tile_b)
            c = jnp.where(ridx < B, c, 0.0)      # select-after-compute
        out_ref[0] = jnp.sum(c, keepdims=True) * jnp.float32(scale)


def weighted_mse(pred, target, sample_w, *, weight: float = 1.0,
                 tile_b: int = 256, tile_d: int = 2048):
    """mean(sample_w * (pred - target)^2) * weight, reduction done in Pallas."""
    B, D = pred.shape

    # Batch tile: aim for >= 2 blocks so the "parallel" axis can shard across
    # v7x's two TensorCores, while keeping the sublane dim a multiple of 8
    # (or the full dim when B <= 8).
    if B <= 8:
        tb = B
    elif B <= tile_b:
        tb = _round_up(pl.cdiv(B, 2), 8)
    else:
        tb = tile_b
    td = D if D <= tile_d else tile_d

    nb = pl.cdiv(B, tb)
    nd = pl.cdiv(D, td)
    mask_rows = (B % tb) != 0
    mask_cols = (D % td) != 0
    scale = float(weight) / float(B * D)

    in_itemsize = jnp.dtype(pred.dtype).itemsize
    block_bytes = tb * td * in_itemsize
    # 2 inputs x 2 pipeline buffers + f32 accumulator + small sw/out buffers.
    vmem_needed = 2 * 2 * block_bytes + tb * td * 4 + 8 * tb + 4096
    vmem_limit = int(min(max(int(vmem_needed * 1.5), 8 << 20), 32 << 20))

    cost = pl.CostEstimate(
        flops=4 * B * D,
        transcendentals=0,
        bytes_accessed=2 * B * D * in_itemsize
        + B * jnp.dtype(sample_w.dtype).itemsize + 4 * nb,
    )

    partials = pl.pallas_call(
        functools.partial(_wmse_kernel, scale=scale, B=B, D=D,
                          tile_b=tb, tile_d=td,
                          mask_rows=mask_rows, mask_cols=mask_cols),
        out_shape=jax.ShapeDtypeStruct((nb, 1, 1), jnp.float32),
        grid_spec=pltpu.PrefetchScalarGridSpec(
            num_scalar_prefetch=0,
            grid=(nb, nd),
            in_specs=[
                pl.BlockSpec((tb, td), lambda i, j: (i, j)),
                pl.BlockSpec((tb, td), lambda i, j: (i, j)),
                # Constant block index over j -> sample weights stay
                # VMEM-resident across the whole reduction loop.
                pl.BlockSpec((tb, 1), lambda i, j: (i, 0)),
            ],
            out_specs=pl.BlockSpec((1, 1, 1), lambda i, j: (i, 0, 0)),
            scratch_shapes=[pltpu.VMEM((tb, td), jnp.float32)],
        ),
        compiler_params=pltpu.CompilerParams(
            dimension_semantics=("parallel", "arbitrary"),
            vmem_limit_bytes=vmem_limit),
        cost_estimate=cost,
    )(pred, target, sample_w)

    # Per-batch-chunk partials (already weight-scaled) -> final scalar.
    # Trivial XLA sum; keeps the batch grid axis truly parallel for megacore.
    return jnp.sum(partials)


# ----------------------------------------------------------------------------
# Python-side module mirroring the torch class
# ----------------------------------------------------------------------------
class Loss:
    def __init__(self, weight: float = 1.0):
        self.weight = weight

    def forward(self, inputs, outputs, targets, sample_weights=None):
        # Reference semantics: self.eval(...) * self.weight.  Routed through
        # eval_scaled so concrete losses can fuse the scale into their own
        # reduction kernel's finalize (no extra kernel / HBM round trip).
        return self.eval_scaled(inputs, outputs, targets,
                                sample_weights or {}, self.weight)

    def eval_scaled(self, inputs, outputs, targets, sample_weights, weight):
        # Default (generic) path: plain JAX scale.  XLA fuses the scalar
        # multiply into the producer of `loss`; a standalone Pallas kernel
        # here would only add an extra HBM read+write.
        loss = self.eval(inputs, outputs, targets, sample_weights)
        return loss * weight

    def eval(self, inputs, outputs, targets, sample_weights=None):
        # Abstract in the reference module.
        assert False, "Not implemented!"

    @staticmethod
    def grad(y, x):
        # TODO(synk): torch.autograd.grad on live tensors has no direct
        # JAX/Pallas analogue (JAX differentiates functions, not tensors).
        raise NotImplementedError


class WeightedMSELoss(Loss):
    """Concrete demo subclass so the abstract `eval` hot path runs in Pallas."""

    def eval(self, inputs, outputs, targets, sample_weights=None):
        return self._wmse(outputs, targets, sample_weights or {}, 1.0)

    def eval_scaled(self, inputs, outputs, targets, sample_weights, weight):
        # Fused: the `* weight` of Loss.forward happens inside the reduction
        # kernel's finalize (no extra kernel launch / HBM round trip).
        return self._wmse(outputs, targets, sample_weights, weight)

    @staticmethod
    def _wmse(outputs, targets, sample_weights, weight):
        pred = outputs["pred"]
        tgt = targets["pred"]
        sw = sample_weights.get(
            "pred", jnp.ones((pred.shape[0], 1), jnp.float32))
        return weighted_mse(pred, tgt, sw, weight=weight)


def _ref_wmse(pred, target, sw, weight):
    p = pred.astype(jnp.float32)
    t = target.astype(jnp.float32)
    B, D = pred.shape
    return weight * jnp.sum(sw.astype(jnp.float32) * (p - t) ** 2) / (B * D)


# ----------------------------------------------------------------------------
if __name__ == "__main__":
    key = jax.random.PRNGKey(0)
    k1, k2, k3 = jax.random.split(key, 3)

    # Primary small-shape check (f32).
    B, D = 8, 256
    pred = jax.random.normal(k1, (B, D), jnp.float32)
    target = jax.random.normal(k2, (B, D), jnp.float32)
    sw = jax.random.uniform(k3, (B, 1), jnp.float32)

    loss_mod = WeightedMSELoss(weight=0.5)
    loss = loss_mod.forward({}, {"pred": pred}, {"pred": target},
                            {"pred": sw})
    loss = jax.block_until_ready(loss)
    ref = _ref_wmse(pred, target, sw, 0.5)
    assert jnp.allclose(loss, ref, rtol=1e-5, atol=1e-6), (loss, ref)

    # Ragged batch (row-mask in finalize) + >=2 batch blocks.
    B2, D2 = 20, 300
    p2 = jax.random.normal(k1, (B2, D2), jnp.float32)
    t2 = jax.random.normal(k2, (B2, D2), jnp.float32)
    s2 = jax.random.uniform(k3, (B2, 1), jnp.float32)
    l2 = jax.block_until_ready(weighted_mse(p2, t2, s2, weight=0.25))
    r2 = _ref_wmse(p2, t2, s2, 0.25)
    assert jnp.allclose(l2, r2, rtol=1e-5, atol=1e-6), (l2, r2)

    # Ragged feature dim (edge-block column mask) + bf16 inputs.
    B3, D3 = 16, 2500
    p3 = jax.random.normal(k1, (B3, D3), jnp.float32).astype(jnp.bfloat16)
    t3 = jax.random.normal(k2, (B3, D3), jnp.float32).astype(jnp.bfloat16)
    s3 = jax.random.uniform(k3, (B3, 1), jnp.float32)
    l3 = jax.block_until_ready(weighted_mse(p3, t3, s3, weight=2.0))
    r3 = _ref_wmse(p3, t3, s3, 2.0)
    assert jnp.allclose(l3, r3, rtol=1e-4, atol=1e-5), (l3, r3)

    print("KERNEL_OK")
</pallas_src>

<mosaic_0001>
module attributes {stable_mosaic.version = 11 : i64} {
  func.func @_wmse_kernel(%arg0: i32, %arg1: i32, %arg2: memref<8x256xf32, #tpu.memory_space<vmem>>, %arg3: memref<8x256xf32, #tpu.memory_space<vmem>>, %arg4: memref<8x1xf32, #tpu.memory_space<vmem>>, %arg5: memref<1x1x1xf32, #tpu.memory_space<vmem>>, %arg6: memref<8x256xf32, #tpu.memory_space<vmem>>) attributes {dimension_semantics = [#tpu.dimension_semantics<parallel>, #tpu.dimension_semantics<arbitrary>], iteration_bounds = array<i64: 1, 1>, scalar_prefetch = 0 : i64, scratch_operands = 1 : i64, tpu.core_type = #tpu.core_type<tc>, window_params = [{transform_indices = @transform_0, window_bounds = array<i64: 8, 256>}, {transform_indices = @transform_1, window_bounds = array<i64: 8, 256>}, {transform_indices = @transform_2, window_bounds = array<i64: 8, 1>}, {transform_indices = @transform_3, window_bounds = array<i64: 1, 1, 1>}]} {
    %c0_i32 = arith.constant 0 : i32
    %0 = arith.cmpi eq, %arg1, %c0_i32 : i32
    %1 = arith.extui %0 : i1 to i32
    %c0_i32_0 = arith.constant 0 : i32
    %2 = arith.cmpi ne, %1, %c0_i32_0 : i32
    scf.if %2 {
      %cst = arith.constant 0.000000e+00 : f32
      %13 = vector.broadcast %cst : f32 to vector<8x256xf32>
      %c0_10 = arith.constant 0 : index
      %c0_11 = arith.constant 0 : index
      %14 = vector.load %arg6[%c0_10, %c0_11] : memref<8x256xf32, #tpu.memory_space<vmem>>, vector<8x256xf32>
      tpu.vector_store %arg6[%c0_10, %c0_11], %13 {strides = array<i32>} : memref<8x256xf32, #tpu.memory_space<vmem>>, vector<8x256xf32>,
    } else {
    }
    %c0 = arith.constant 0 : index
    %c0_1 = arith.constant 0 : index
    %3 = vector.load %arg2[%c0, %c0_1] : memref<8x256xf32, #tpu.memory_space<vmem>>, vector<8x256xf32>
    %c0_2 = arith.constant 0 : index
    %c0_3 = arith.constant 0 : index
    %4 = vector.load %arg3[%c0_2, %c0_3] : memref<8x256xf32, #tpu.memory_space<vmem>>, vector<8x256xf32>
    %5 = arith.subf %3, %4 : vector<8x256xf32>
    %6 = arith.mulf %5, %5 : vector<8x256xf32>
    %c0_4 = arith.constant 0 : index
    %c0_5 = arith.constant 0 : index
    %7 = vector.load %arg6[%c0_4, %c0_5] : memref<8x256xf32, #tpu.memory_space<vmem>>, vector<8x256xf32>
    %8 = arith.addf %7, %6 : vector<8x256xf32>
    %c0_6 = arith.constant 0 : index
    %c0_7 = arith.constant 0 : index
    %9 = vector.load %arg6[%c0_6, %c0_7] : memref<8x256xf32, #tpu.memory_space<vmem>>, vector<8x256xf32>
    tpu.vector_store %arg6[%c0_6, %c0_7], %8 {strides = array<i32>} : memref<8x256xf32, #tpu.memory_space<vmem>>, vector<8x256xf32>,
    %c0_i32_8 = arith.constant 0 : i32
    %10 = arith.cmpi eq, %arg1, %c0_i32_8 : i32
    %11 = arith.extui %10 : i1 to i32
    %c0_i32_9 = arith.constant 0 : i32
    %12 = arith.cmpi ne, %11, %c0_i32_9 : i32
    scf.if %12 {
      %c0_10 = arith.constant 0 : index
      %c0_11 = arith.constant 0 : index
      %13 = vector.load %arg6[%c0_10, %c0_11] : memref<8x256xf32, #tpu.memory_space<vmem>>, vector<8x256xf32>
      %cst = arith.constant dense<0.000000e+00> : vector<8xf32>
      %14 = vector.multi_reduction <add>, %13, %cst [1] : vector<8x256xf32> to vector<8xf32>
      %15 = vector.shape_cast %14 : vector<8xf32> to vector<8x1xf32>
      %c0_12 = arith.constant 0 : index
      %c0_13 = arith.constant 0 : index
      %16 = vector.load %arg4[%c0_12, %c0_13] : memref<8x1xf32, #tpu.memory_space<vmem>>, vector<8x1xf32>
      %17 = arith.mulf %15, %16 : vector<8x1xf32>
      %18 = vector.shape_cast %17 : vector<8x1xf32> to vector<1x8x1xf32>
      %cst_14 = arith.constant dense<0.000000e+00> : vector<1xf32>
      %19 = vector.multi_reduction <add>, %18, %cst_14 [1, 2] : vector<1x8x1xf32> to vector<1xf32>
      %20 = vector.shape_cast %19 : vector<1xf32> to vector<1x1x1xf32>
      %21 = vector.extract %20[0, 0, 0] : f32 from vector<1x1x1xf32>
      %22 = vector.broadcast %21 : f32 to vector<1x1xf32>
      %cst_15 = arith.constant 2.44140625E-4 : f32
      %23 = vector.broadcast %cst_15 : f32 to vector<1x1xf32>
      %24 = arith.mulf %22, %23 : vector<1x1xf32>
      %c0_16 = arith.constant 0 : index
      %c0_17 = arith.constant 0 : index
      %c0_18 = arith.constant 0 : index
      %25 = vector.load %arg5[%c0_16, %c0_17, %c0_18] : memref<1x1x1xf32, #tpu.memory_space<vmem>>, vector<1x1x1xf32>
      %26 = vector.shape_cast %25 : vector<1x1x1xf32> to vector<1x1xf32>
      %27 = vector.shape_cast %24 : vector<1x1xf32> to vector<1x1x1xf32>
      tpu.vector_store %arg5[%c0_16, %c0_17, %c0_18], %27 {strides = array<i32>} : memref<1x1x1xf32, #tpu.memory_space<vmem>>, vector<1x1x1xf32>,
    } else {
    }
    return
  }
  func.func @transform_0(%arg0: i32, %arg1: i32) -> (i32, i32) {
    %c0_i32 = arith.constant 0 : i32
    return %arg0, %arg1 : i32, i32
  }
  func.func @transform_1(%arg0: i32, %arg1: i32) -> (i32, i32) {
    %c0_i32 = arith.constant 0 : i32
    return %arg0, %arg1 : i32, i32
  }
  func.func @transform_2(%arg0: i32, %arg1: i32) -> (i32, i32) {
    %c0_i32 = arith.constant 0 : i32
    %c0_i32_0 = arith.constant 0 : i32
    return %arg0, %c0_i32 : i32, i32
  }
  func.func @transform_3(%arg0: i32, %arg1: i32) -> (i32, i32, i32) {
    %c0_i32 = arith.constant 0 : i32
    %c0_i32_0 = arith.constant 0 : i32
    %c0_i32_1 = arith.constant 0 : i32
    return %arg0, %c0_i32, %c0_i32_0 : i32, i32, i32
  }
}

</mosaic_0001>

<llo_original>
// kernel: tpu_custom_call.1
$region0: #{tpu_custom_call.1}
  #allocation0 [shape = 'u32[]', space=smem, size = 0x4, offset = 0x4, fixed_abs, tag = 'smem constant byte address 0x4 - core index']
  #allocation1 [shape = 'u32[72,128]{1,0:T(1,128)}', space=vmem, size = 0x9000, scoped, tag = 'internal scratch']
  #allocation2 [shape = 'f32[8,256]{1,0:T(8,128)}', space=vmem, size = 0x2000, scoped, tag = 'scratch operand']
  %s0 = inlined_call_operand.hbm [shape: f32[8,256], index: 0, kind: input, shape index: {}]
  %s1 = inlined_call_operand.hbm [shape: f32[8,256], index: 1, kind: input, shape index: {}]
  %s2 = inlined_call_operand.vmem [shape: f32[8,1], index: 2, kind: input, shape index: {}]
  %s3 = inlined_call_operand.hbm [shape: f32[1,1,1], index: 3, kind: output, shape index: {}]
  %s4 = sld [smem:[#allocation0]]
  $region38: #{tpu_custom_call.1} parent=0
    _
  %s6 = ssub.s32 1, %s4
  %s7 = scalar_select 0, %s6, %s4
  $region1: #{tpu_custom_call.1} parent=0
    #allocation3 [shape = 'u8[8192]{0}', space=vmem, size = 0x2000, scoped, tag = 'input window, operand 0, single buffered']
    #allocation4 [shape = 's32[1]{0}', space=sflag, size = 0x4, scoped, tag = 'scoped memory for tpu_custom_call.1']
    #allocation5 [shape = 's32[1]{0}', space=sflag, size = 0x4, scoped, tag = 'scoped memory for tpu_custom_call.1']
    #allocation6 [shape = 'u8[8192]{0}', space=vmem, size = 0x2000, scoped, tag = 'input window, operand 1, single buffered']
    #allocation7 [shape = 's32[1]{0}', space=sflag, size = 0x4, scoped, tag = 'scoped memory for tpu_custom_call.1']
    #allocation8 [shape = 'u8[512]{0}', space=vmem, size = 0x400, scoped, tag = 'output window, operand 0, single buffered']
    %8 = vsyncpa [#allocation4], 0
    %9 = vsyncpa [#allocation7], 0
    %10 = vsyncpa [#allocation5], 0
    // Predicated region
    $region2: #{tpu_custom_call.1} parent=1 // pred_check
      _
    $region3: #{tpu_custom_call.1} parent=1 // pred_check_branch
      %12 = sbr.rel (0) target = $region5
    $region4: #{tpu_custom_call.1} parent=1 // pred_region
      %14 = vsyncadd [#allocation4], 0
      %s16 = sshll.u32 %s0, 4
      %s17 = int_to_ptr.hbm [resolvable:$true] %s16
      %s18 = sshll.u32 [#allocation3], 4
      %s19 = int_to_ptr.vmem [resolvable:$true] %s18
      %21 = dma.hbm_to_vmem [thread:$0]  %s17, 256, %s19, [#allocation4]
    $region5: #{tpu_custom_call.1} parent=1 // pred_fallthru
      _
    // Predicated region
    $region6: #{tpu_custom_call.1} parent=1 // pred_check
      _
    $region7: #{tpu_custom_call.1} parent=1 // pred_check_branch
      %23 = sbr.rel (0) target = $region9
    $region8: #{tpu_custom_call.1} parent=1 // pred_region
      %25 = vsyncadd [#allocation7], 0
      %s27 = sshll.u32 %s1, 4
      %s28 = int_to_ptr.hbm [resolvable:$true] %s27
      %s29 = sshll.u32 [#allocation6], 4
      %s30 = int_to_ptr.vmem [resolvable:$true] %s29
      %32 = dma.hbm_to_vmem [thread:$0]  %s28, 256, %s30, [#allocation7]
    $region9: #{tpu_custom_call.1} parent=1 // pred_fallthru
      _
    // Predicated region
    $region10: #{tpu_custom_call.1} parent=1 // pred_check
      _
    $region11: #{tpu_custom_call.1} parent=1 // pred_check_branch
      %34 = sbr.rel (0) target = $region13
    $region12: #{tpu_custom_call.1} parent=1 // pred_region
      _
    $region13: #{tpu_custom_call.1} parent=1 // pred_fallthru
      _
    // Predicated region
    $region14: #{tpu_custom_call.1} parent=1 // pred_check
      _
    $region15: #{tpu_custom_call.1} parent=1 // pred_check_branch
      %36 = sbr.rel (0) target = $region17
    $region16: #{tpu_custom_call.1} parent=1 // pred_region
      %38 = dma.done [#allocation4], 256
    $region17: #{tpu_custom_call.1} parent=1 // pred_fallthru
      _
    // Predicated region
    $region18: #{tpu_custom_call.1} parent=1 // pred_check
      _
    $region19: #{tpu_custom_call.1} parent=1 // pred_check_branch
      %40 = sbr.rel (0) target = $region21
    $region20: #{tpu_custom_call.1} parent=1 // pred_region
      %42 = dma.done [#allocation7], 256
    $region21: #{tpu_custom_call.1} parent=1 // pred_fallthru
      _
    %p43 = scmp.eq.s32.totalorder 0, 0
    // Predicated region
    $region22: #{tpu_custom_call.1} parent=1 // pred_check
      %p44 = pneg %p43
    $region23: #{tpu_custom_call.1} parent=1 // pred_check_branch
      %46 = sbr.rel (%p44) target = $region25
    $region24: #{tpu_custom_call.1} parent=1 // pred_region
      %47 = vst [vmem:[#allocation2] sm:$0xff] 0.0
      %48 = vst [vmem:[#allocation2 + $0x8] sm:$0xff] 0.0
    $region25: #{tpu_custom_call.1} parent=1 // pred_fallthru
      _
    %v49 = vld [vmem:[#allocation3] sm:$0xff]
    %v50 = vld [vmem:[#allocation3 + $0x8] sm:$0xff]
    %v51 = vld [vmem:[#allocation6] sm:$0xff]
    %v52 = vld [vmem:[#allocation6 + $0x8] sm:$0xff]
    %v53 = vsub.f32 %v49, %v51
    %v54 = vsub.f32 %v50, %v52
    %v55 = vmul.f32 %v53, %v53
    %v56 = vmul.f32 %v54, %v54
    %v57 = vld [vmem:[#allocation2] sm:$0xff]
    %v58 = vld [vmem:[#allocation2 + $0x8] sm:$0xff]
    %v59 = vadd.f32 %v57, %v55
    %v60 = vadd.f32 %v58, %v56
    %61 = vst [vmem:[#allocation2] sm:$0xff] %v59
    %62 = vst [vmem:[#allocation2 + $0x8] sm:$0xff] %v60
    // Predicated region
    $region26: #{tpu_custom_call.1} parent=1 // pred_check
      %p63 = pneg %p43
    $region27: #{tpu_custom_call.1} parent=1 // pred_check_branch
      %65 = sbr.rel (%p63) target = $region29
    $region28: #{tpu_custom_call.1} parent=1 // pred_region
      %v66 = vld [vmem:[#allocation2] sm:$0xff]
      %v67 = vld [vmem:[#allocation2 + $0x8] sm:$0xff]
      %v68 = vadd.f32 %v66, %v67
      %69 = vadd.xlane.f32.xlu0 %v68
      %v70 = vpop.xlane.xlu0 %69
      %v71 = vld [vmem:[%s2] sm:$0xff]
      %v72 = vmul.f32 %v70, %v71
      %vm73 = vcmask 7168
      %v74 = vsel %vm73, %v72, 0.0
      %75 = vadd.xlane.f32.xlu0 %v74
      %v76 = vpop.xlane.xlu0 %75
      %v77 = vrot.slane %v76, 4
      %v78 = vadd.f32 %v76, %v77
      %v79 = vrot.slane %v78, 2
      %v80 = vadd.f32 %v78, %v79
      %v81 = vrot.slane %v80, 1
      %v82 = vadd.f32 %v80, %v81
      %s83 = vtos %v82
      %v84 = vstv %s83
      %v85 = vmul.f32 %v84, 0.00024414063
      %vm86 = vcmask 0
      %87 = vst.msk [vmem:[#allocation8] sm:$0x1] %vm86, %v85
    $region29: #{tpu_custom_call.1} parent=1 // pred_fallthru
      _
    // Predicated region
    $region30: #{tpu_custom_call.1} parent=1 // pred_check
      _
    $region31: #{tpu_custom_call.1} parent=1 // pred_check_branch
      %89 = sbr.rel (0) target = $region33
    $region32: #{tpu_custom_call.1} parent=1 // pred_region
      %91 = vsyncadd [#allocation5], 0
      %s93 = sshll.u32 [#allocation8], 4
      %s94 = int_to_ptr.vmem [resolvable:$true] %s93
      %s95 = sshll.u32 %s3, 4
      %s96 = int_to_ptr.hbm [resolvable:$true] %s95
      %98 = dma.vmem_to_hbm [thread:$0]  %s94, 16, %s96, [#allocation5]
    $region33: #{tpu_custom_call.1} parent=1 // pred_fallthru
      _
    // Predicated region
    $region34: #{tpu_custom_call.1} parent=1 // pred_check
      _
    $region35: #{tpu_custom_call.1} parent=1 // pred_check_branch
      %100 = sbr.rel (0) target = $region37
    $region36: #{tpu_custom_call.1} parent=1 // pred_region
      %102 = dma.done [#allocation5], 16
    $region37: #{tpu_custom_call.1} parent=1 // pred_fallthru
      _
    %103 = vsyncpa [#allocation4], 1
    %104 = vsyncpa [#allocation7], 1
    %105 = vsyncpa [#allocation5], 1

</llo_original>
